<compile_context>
chip_gen: v7x
topology: tpu7x:2x2x1
jax: 0.10.0
libtpu: 0.0.40
codegen_flags: <defaults>
</compile_context>

<pallas_src>
import jax
import jax.numpy as jnp
import numpy as np
from jax.experimental import pallas as pl
from jax.experimental.pallas import tpu as pltpu

# MXU operand dtype: bf16 doubles MXU rate on v6e/v7x and avoids the multi-pass
# f32 matmul emulation on v5e.  Set to jnp.float32 for a bit-tight check.
_MXU_DTYPE = jnp.bfloat16

_TAPS = tuple((a, b) for a in range(3) for b in range(3))


def _build_polyphase_weight(weight, dtype):
    """Pack the ConvTranspose2d weight (Cin, Cout, 4, 4) into one (9*Cin, 4*Cout)
    matrix so the whole stride-2 transposed conv becomes tap-wise matmuls over a
    3x3 window of the 1-padded (NOT zero-dilated) input.

    Row block t = 3*ra + rb  <-> input tap xp[m+ra, n+rb]      (ra, rb in 0..2)
    Col block p = 2*pr + pc  <-> output pixel (2m+pr, 2n+pc)   (pr, pc in 0..1)
    Unused (phase, tap) combinations are structural zeros (2.25x K overhead,
    acceptable while 4*Cout is small; see TODO in the kernel for large layers).
    """
    Cin, Cout = weight.shape[0], weight.shape[1]
    # (parity, tap-offset) -> kernel index, identical for rows and columns:
    #   even output: kh/kw in {3 (offset 0), 1 (offset 1)}
    #   odd  output: kh/kw in {2 (offset 1), 0 (offset 2)}
    k_map = {(0, 0): 3, (0, 1): 1, (1, 1): 2, (1, 2): 0}
    wbig = jnp.zeros((9 * Cin, 4 * Cout), jnp.float32)
    for pr in range(2):
        for pc in range(2):
            p = 2 * pr + pc
            for ra in range(3):
                kh = k_map.get((pr, ra))
                if kh is None:
                    continue
                for rb in range(3):
                    kw = k_map.get((pc, rb))
                    if kw is None:
                        continue
                    t = 3 * ra + rb
                    wbig = wbig.at[t * Cin:(t + 1) * Cin,
                                   p * Cout:(p + 1) * Cout].set(weight[:, :, kh, kw])
    return wbig.astype(dtype)


def _unet_up_kernel(xp_ref, w_ref, out_ref):
    # xp_ref : (1, H+2, W+2, Cin)   1-pixel zero-padded NHWC input (MXU dtype)
    # w_ref  : (9*Cin, 4*Cout)      polyphase-packed ConvTranspose2d weight
    # out_ref: (1, H*W, 4*Cout) f32 norm+ReLU'd conv result, phase-blocked:
    #          out[m*W+n, (2*pr+pc)*Cout + c] = y[2m+pr, 2n+pc, c]
    H = xp_ref.shape[1] - 2
    W = xp_ref.shape[2] - 2
    Cin = xp_ref.shape[3]
    Cout = out_ref.shape[2] // 4

    xp = xp_ref[0]          # (H+2, W+2, Cin), loaded once
    w = w_ref[...]          # (9*Cin, 4*Cout), constant across the batch grid

    # Polyphase transposed conv as tap accumulation: one MXU matmul per 3x3 tap
    # of the padded input, K = Cin, N = 4*Cout (all four output-pixel parities
    # at once).  No im2col patch is ever materialized in VMEM.
    acc = jnp.zeros((H * W, 4 * Cout), jnp.float32)
    for t, (a, b) in enumerate(_TAPS):
        tap = xp[a:a + H, b:b + W, :].reshape(H * W, Cin)
        acc = acc + jnp.dot(tap, w[t * Cin:(t + 1) * Cin, :],
                            preferred_element_type=jnp.float32)
    # TODO(synk): when 4*Cout >= 256, split into 4 per-phase matmuls with
    # K = 4*Cin to drop the 2.25x structural-zero K overhead of this packing.

    # InstanceNorm2d (affine=False, eps=1e-5, biased var): per-channel stats
    # over all OH*OW = 4*H*W positions in ONE pass (sum & sum-of-squares) on
    # the phase-blocked accumulator, combined across the 4 phase groups.
    npix = 4.0 * H * W
    colsum = jnp.sum(acc, axis=0, keepdims=True)               # (1, 4*Cout)
    colsq = jnp.sum(acc * acc, axis=0, keepdims=True)          # (1, 4*Cout)
    s1 = colsum[:, 0:Cout]
    s2 = colsq[:, 0:Cout]
    for p in range(1, 4):
        s1 = s1 + colsum[:, p * Cout:(p + 1) * Cout]
        s2 = s2 + colsq[:, p * Cout:(p + 1) * Cout]
    mean = s1 / npix                                            # (1, Cout)
    var = jnp.maximum(s2 / npix - mean * mean, 0.0)             # clamp cancellation
    inv = jax.lax.rsqrt(var + 1e-5)
    scale = jnp.concatenate([inv] * 4, axis=1)                  # (1, 4*Cout)
    bias = jnp.concatenate([mean * inv] * 4, axis=1)            # (1, 4*Cout)

    # normalize + ReLU; skip never enters the kernel, no concat here.
    out_ref[0] = jnp.maximum(acc * scale - bias, 0.0).astype(out_ref.dtype)


def _vmem_limit_bytes(H, W, Cin, Cout):
    mxu = np.dtype(_MXU_DTYPE).itemsize
    xp_blk = (H + 2) * (W + 2) * Cin * mxu
    w_blk = 9 * Cin * 4 * Cout * mxu
    out_blk = H * W * 4 * Cout * 4
    acc = H * W * 4 * Cout * 4
    taps = 2 * H * W * Cin * mxu                 # live tap slices / relayouts
    need = 2 * (xp_blk + w_blk + out_blk) + acc + taps
    # generous headroom for Mosaic-internal scratch, clamped to sane bounds.
    return int(min(max(2 * need + (8 << 20), 32 << 20), 96 << 20))


def unet_up_forward(x_nchw, skip_nchw, weight):
    """UNetUp.forward.

    x_nchw    : (N, Cin, H, W)      float32
    skip_nchw : (N, Cout, 2H, 2W)   float32
    weight    : (Cin, Cout, 4, 4)   float32  (PyTorch ConvTranspose2d layout)
    returns   : (N, 2*Cout, 2H, 2W) float32
    """
    N, Cin, H, W = x_nchw.shape
    Cout = weight.shape[1]
    OH, OW = 2 * H, 2 * W

    # NCHW -> NHWC + 1-pixel border pad; cast to the MXU dtype here so the
    # kernel's input DMA is already half-width.  This is the only XLA pass
    # over x (no zero-dilated intermediate).
    xp = jnp.pad(jnp.transpose(x_nchw, (0, 2, 3, 1)),
                 ((0, 0), (1, 1), (1, 1), (0, 0))).astype(_MXU_DTYPE)

    wbig = _build_polyphase_weight(weight, _MXU_DTYPE)          # (9*Cin, 4*Cout)

    yq = pl.pallas_call(
        _unet_up_kernel,
        out_shape=jax.ShapeDtypeStruct((N, H * W, 4 * Cout), jnp.float32),
        grid_spec=pltpu.PrefetchScalarGridSpec(
            num_scalar_prefetch=0,
            grid=(N,),
            in_specs=[
                pl.BlockSpec((1, H + 2, W + 2, Cin), lambda n: (n, 0, 0, 0)),
                # Constant index_map -> the weight block is fetched once and
                # revisited across the batch grid.  TODO(synk): K-tile it over
                # a grid axis (or single-buffer it) for large-channel layers so
                # the default 2x pipeline buffer does not eat VMEM.
                pl.BlockSpec((9 * Cin, 4 * Cout), lambda n: (0, 0)),
            ],
            out_specs=pl.BlockSpec((1, H * W, 4 * Cout), lambda n: (n, 0, 0)),
        ),
        compiler_params=pltpu.CompilerParams(
            dimension_semantics=("parallel",),
            vmem_limit_bytes=_vmem_limit_bytes(H, W, Cin, Cout)),
    )(xp, wbig)

    # De-interleave the four output phases and return to NCHW in ONE transpose
    # (the NHWC->NCHW transpose that was needed anyway), then channel-concat
    # with the untouched NCHW skip tensor.
    # TODO(synk): on v5e, emit the phase-deinterleaved NCHW block directly from
    # the kernel (XLU rides in MXU slack) to remove these post-kernel HBM passes.
    y = yq.reshape(N, H, W, 2, 2, Cout)            # (n, m, w, pr, pc, c)
    y = jnp.transpose(y, (0, 5, 1, 3, 2, 4))       # (n, c, m, pr, w, pc)
    y = y.reshape(N, Cout, OH, OW)
    return jnp.concatenate([y, skip_nchw], axis=1)


def _reference_numpy(x, skip, w):
    """Pure numpy reference matching PyTorch UNetUp.forward exactly."""
    N, Cin, H, W = x.shape
    Cout = w.shape[1]
    OH, OW = 2 * H, 2 * W
    y = np.zeros((N, Cout, OH, OW), np.float64)
    # Direct ConvTranspose2d scatter formula: oh = 2*ih - 1 + kh.
    for ih in range(H):
        for iw in range(W):
            for kh in range(4):
                for kw in range(4):
                    oh = 2 * ih - 1 + kh
                    ow = 2 * iw - 1 + kw
                    if 0 <= oh < OH and 0 <= ow < OW:
                        y[:, :, oh, ow] += np.einsum(
                            "nc,cd->nd", x[:, :, ih, iw], w[:, :, kh, kw]
                        )
    # InstanceNorm2d (affine=False, eps=1e-5, biased var) + ReLU.
    mean = y.mean(axis=(2, 3), keepdims=True)
    var = y.var(axis=(2, 3), keepdims=True)
    y = (y - mean) / np.sqrt(var + 1e-5)
    y = np.maximum(y, 0.0)
    return np.concatenate([y, skip], axis=1)


if __name__ == "__main__":
    # Small shapes consistent with the module: in_size=8, out_size=8,
    # x: (2, 8, 8, 8) NCHW, skip: (2, 8, 16, 16) NCHW (spatial already doubled).
    N, Cin, Cout, H, W = 2, 8, 8, 8, 8
    key = jax.random.PRNGKey(0)
    kx, ks, kw = jax.random.split(key, 3)
    x = jax.random.normal(kx, (N, Cin, H, W), jnp.float32)
    skip = jax.random.normal(ks, (N, Cout, 2 * H, 2 * W), jnp.float32)
    # Deterministic synthetic weight, PyTorch ConvTranspose2d layout (Cin, Cout, kH, kW).
    weight = 0.1 * jax.random.normal(kw, (Cin, Cout, 4, 4), jnp.float32)

    out = jax.jit(unet_up_forward)(x, skip, weight)
    out = jax.block_until_ready(out)

    ref = _reference_numpy(np.asarray(x), np.asarray(skip), np.asarray(weight))
    tol = 1e-4 if _MXU_DTYPE == jnp.float32 else 3e-2   # bf16 MXU operands -> looser check
    np.testing.assert_allclose(np.asarray(out), ref, rtol=tol, atol=tol)

    # TODO(synk): Dropout branch is disabled by default (dropout=0.0) so it is not implemented.
    print("KERNEL_OK")
</pallas_src>

<mosaic_0001>
module attributes {stable_mosaic.version = 11 : i64} {
  func.func @_unet_up_kernel(%arg0: i32, %arg1: memref<1x10x10x8xbf16, #tpu.memory_space<vmem>>, %arg2: memref<72x32xbf16, #tpu.memory_space<vmem>>, %arg3: memref<1x64x32xf32, #tpu.memory_space<vmem>>) attributes {dimension_semantics = [#tpu.dimension_semantics<parallel>], iteration_bounds = array<i64: 2>, scalar_prefetch = 0 : i64, scratch_operands = 0 : i64, tpu.core_type = #tpu.core_type<tc>, window_params = [{transform_indices = @transform_0, window_bounds = array<i64: 1, 10, 10, 8>}, {pipeline_mode = #tpu.pipeline_mode<synchronous>, transform_indices = @transform_1, window_bounds = array<i64: 72, 32>}, {transform_indices = @transform_2, window_bounds = array<i64: 1, 64, 32>}]} {
    %c0 = arith.constant 0 : index
    %c0_0 = arith.constant 0 : index
    %c0_1 = arith.constant 0 : index
    %c0_2 = arith.constant 0 : index
    %0 = vector.load %arg1[%c0, %c0_0, %c0_1, %c0_2] : memref<1x10x10x8xbf16, #tpu.memory_space<vmem>>, vector<1x10x10x8xbf16>
    %1 = vector.shape_cast %0 : vector<1x10x10x8xbf16> to vector<10x10x8xbf16>
    %c0_3 = arith.constant 0 : index
    %c0_4 = arith.constant 0 : index
    %2 = vector.load %arg2[%c0_3, %c0_4] : memref<72x32xbf16, #tpu.memory_space<vmem>>, vector<72x32xbf16>
    %cst = arith.constant 0.000000e+00 : f32
    %3 = vector.broadcast %cst : f32 to vector<64x32xf32>
    %4 = vector.extract_strided_slice %1 {offsets = [0, 0, 0], sizes = [8, 8, 8], strides = [1, 1, 1]} : vector<10x10x8xbf16> to vector<8x8x8xbf16>
    %5 = vector.shape_cast %4 : vector<8x8x8xbf16> to vector<64x8xbf16>
    %6 = vector.extract_strided_slice %2 {offsets = [0, 0], sizes = [8, 32], strides = [1, 1]} : vector<72x32xbf16> to vector<8x32xbf16>
    %cst_5 = arith.constant dense<0.000000e+00> : vector<64x32xf32>
    %7 = tpu.matmul %5, %6, %cst_5 {dimension_numbers = #tpu.dot_dimension_numbers<[1], [0], [0], [1], [0, 0, 1, 1], [], []>} : vector<64x8xbf16>, vector<8x32xbf16>, vector<64x32xf32> -> vector<64x32xf32>
    %8 = arith.addf %3, %7 : vector<64x32xf32>
    %9 = vector.extract_strided_slice %1 {offsets = [0, 1, 0], sizes = [8, 8, 8], strides = [1, 1, 1]} : vector<10x10x8xbf16> to vector<8x8x8xbf16>
    %10 = vector.shape_cast %9 : vector<8x8x8xbf16> to vector<64x8xbf16>
    %11 = vector.extract_strided_slice %2 {offsets = [8, 0], sizes = [8, 32], strides = [1, 1]} : vector<72x32xbf16> to vector<8x32xbf16>
    %cst_6 = arith.constant dense<0.000000e+00> : vector<64x32xf32>
    %12 = tpu.matmul %10, %11, %cst_6 {dimension_numbers = #tpu.dot_dimension_numbers<[1], [0], [0], [1], [0, 0, 1, 1], [], []>} : vector<64x8xbf16>, vector<8x32xbf16>, vector<64x32xf32> -> vector<64x32xf32>
    %13 = arith.addf %8, %12 : vector<64x32xf32>
    %14 = vector.extract_strided_slice %1 {offsets = [0, 2, 0], sizes = [8, 8, 8], strides = [1, 1, 1]} : vector<10x10x8xbf16> to vector<8x8x8xbf16>
    %15 = vector.shape_cast %14 : vector<8x8x8xbf16> to vector<64x8xbf16>
    %16 = vector.extract_strided_slice %2 {offsets = [16, 0], sizes = [8, 32], strides = [1, 1]} : vector<72x32xbf16> to vector<8x32xbf16>
    %cst_7 = arith.constant dense<0.000000e+00> : vector<64x32xf32>
    %17 = tpu.matmul %15, %16, %cst_7 {dimension_numbers = #tpu.dot_dimension_numbers<[1], [0], [0], [1], [0, 0, 1, 1], [], []>} : vector<64x8xbf16>, vector<8x32xbf16>, vector<64x32xf32> -> vector<64x32xf32>
    %18 = arith.addf %13, %17 : vector<64x32xf32>
    %19 = vector.extract_strided_slice %1 {offsets = [1, 0, 0], sizes = [8, 8, 8], strides = [1, 1, 1]} : vector<10x10x8xbf16> to vector<8x8x8xbf16>
    %20 = vector.shape_cast %19 : vector<8x8x8xbf16> to vector<64x8xbf16>
    %21 = vector.extract_strided_slice %2 {offsets = [24, 0], sizes = [8, 32], strides = [1, 1]} : vector<72x32xbf16> to vector<8x32xbf16>
    %cst_8 = arith.constant dense<0.000000e+00> : vector<64x32xf32>
    %22 = tpu.matmul %20, %21, %cst_8 {dimension_numbers = #tpu.dot_dimension_numbers<[1], [0], [0], [1], [0, 0, 1, 1], [], []>} : vector<64x8xbf16>, vector<8x32xbf16>, vector<64x32xf32> -> vector<64x32xf32>
    %23 = arith.addf %18, %22 : vector<64x32xf32>
    %24 = vector.extract_strided_slice %1 {offsets = [1, 1, 0], sizes = [8, 8, 8], strides = [1, 1, 1]} : vector<10x10x8xbf16> to vector<8x8x8xbf16>
    %25 = vector.shape_cast %24 : vector<8x8x8xbf16> to vector<64x8xbf16>
    %26 = vector.extract_strided_slice %2 {offsets = [32, 0], sizes = [8, 32], strides = [1, 1]} : vector<72x32xbf16> to vector<8x32xbf16>
    %cst_9 = arith.constant dense<0.000000e+00> : vector<64x32xf32>
    %27 = tpu.matmul %25, %26, %cst_9 {dimension_numbers = #tpu.dot_dimension_numbers<[1], [0], [0], [1], [0, 0, 1, 1], [], []>} : vector<64x8xbf16>, vector<8x32xbf16>, vector<64x32xf32> -> vector<64x32xf32>
    %28 = arith.addf %23, %27 : vector<64x32xf32>
    %29 = vector.extract_strided_slice %1 {offsets = [1, 2, 0], sizes = [8, 8, 8], strides = [1, 1, 1]} : vector<10x10x8xbf16> to vector<8x8x8xbf16>
    %30 = vector.shape_cast %29 : vector<8x8x8xbf16> to vector<64x8xbf16>
    %31 = vector.extract_strided_slice %2 {offsets = [40, 0], sizes = [8, 32], strides = [1, 1]} : vector<72x32xbf16> to vector<8x32xbf16>
    %cst_10 = arith.constant dense<0.000000e+00> : vector<64x32xf32>
    %32 = tpu.matmul %30, %31, %cst_10 {dimension_numbers = #tpu.dot_dimension_numbers<[1], [0], [0], [1], [0, 0, 1, 1], [], []>} : vector<64x8xbf16>, vector<8x32xbf16>, vector<64x32xf32> -> vector<64x32xf32>
    %33 = arith.addf %28, %32 : vector<64x32xf32>
    %34 = vector.extract_strided_slice %1 {offsets = [2, 0, 0], sizes = [8, 8, 8], strides = [1, 1, 1]} : vector<10x10x8xbf16> to vector<8x8x8xbf16>
    %35 = vector.shape_cast %34 : vector<8x8x8xbf16> to vector<64x8xbf16>
    %36 = vector.extract_strided_slice %2 {offsets = [48, 0], sizes = [8, 32], strides = [1, 1]} : vector<72x32xbf16> to vector<8x32xbf16>
    %cst_11 = arith.constant dense<0.000000e+00> : vector<64x32xf32>
    %37 = tpu.matmul %35, %36, %cst_11 {dimension_numbers = #tpu.dot_dimension_numbers<[1], [0], [0], [1], [0, 0, 1, 1], [], []>} : vector<64x8xbf16>, vector<8x32xbf16>, vector<64x32xf32> -> vector<64x32xf32>
    %38 = arith.addf %33, %37 : vector<64x32xf32>
    %39 = vector.extract_strided_slice %1 {offsets = [2, 1, 0], sizes = [8, 8, 8], strides = [1, 1, 1]} : vector<10x10x8xbf16> to vector<8x8x8xbf16>
    %40 = vector.shape_cast %39 : vector<8x8x8xbf16> to vector<64x8xbf16>
    %41 = vector.extract_strided_slice %2 {offsets = [56, 0], sizes = [8, 32], strides = [1, 1]} : vector<72x32xbf16> to vector<8x32xbf16>
    %cst_12 = arith.constant dense<0.000000e+00> : vector<64x32xf32>
    %42 = tpu.matmul %40, %41, %cst_12 {dimension_numbers = #tpu.dot_dimension_numbers<[1], [0], [0], [1], [0, 0, 1, 1], [], []>} : vector<64x8xbf16>, vector<8x32xbf16>, vector<64x32xf32> -> vector<64x32xf32>
    %43 = arith.addf %38, %42 : vector<64x32xf32>
    %44 = vector.extract_strided_slice %1 {offsets = [2, 2, 0], sizes = [8, 8, 8], strides = [1, 1, 1]} : vector<10x10x8xbf16> to vector<8x8x8xbf16>
    %45 = vector.shape_cast %44 : vector<8x8x8xbf16> to vector<64x8xbf16>
    %46 = vector.extract_strided_slice %2 {offsets = [64, 0], sizes = [8, 32], strides = [1, 1]} : vector<72x32xbf16> to vector<8x32xbf16>
    %cst_13 = arith.constant dense<0.000000e+00> : vector<64x32xf32>
    %47 = tpu.matmul %45, %46, %cst_13 {dimension_numbers = #tpu.dot_dimension_numbers<[1], [0], [0], [1], [0, 0, 1, 1], [], []>} : vector<64x8xbf16>, vector<8x32xbf16>, vector<64x32xf32> -> vector<64x32xf32>
    %48 = arith.addf %43, %47 : vector<64x32xf32>
    %cst_14 = arith.constant dense<0.000000e+00> : vector<32xf32>
    %49 = vector.multi_reduction <add>, %48, %cst_14 [0] : vector<64x32xf32> to vector<32xf32>
    %50 = vector.shape_cast %49 : vector<32xf32> to vector<1x32xf32>
    %51 = arith.mulf %48, %48 : vector<64x32xf32>
    %cst_15 = arith.constant dense<0.000000e+00> : vector<32xf32>
    %52 = vector.multi_reduction <add>, %51, %cst_15 [0] : vector<64x32xf32> to vector<32xf32>
    %53 = vector.shape_cast %52 : vector<32xf32> to vector<1x32xf32>
    %54 = vector.extract_strided_slice %50 {offsets = [0, 0], sizes = [1, 8], strides = [1, 1]} : vector<1x32xf32> to vector<1x8xf32>
    %55 = vector.extract_strided_slice %53 {offsets = [0, 0], sizes = [1, 8], strides = [1, 1]} : vector<1x32xf32> to vector<1x8xf32>
    %56 = vector.extract_strided_slice %50 {offsets = [0, 8], sizes = [1, 8], strides = [1, 1]} : vector<1x32xf32> to vector<1x8xf32>
    %57 = arith.addf %54, %56 : vector<1x8xf32>
    %58 = vector.extract_strided_slice %53 {offsets = [0, 8], sizes = [1, 8], strides = [1, 1]} : vector<1x32xf32> to vector<1x8xf32>
    %59 = arith.addf %55, %58 : vector<1x8xf32>
    %60 = vector.extract_strided_slice %50 {offsets = [0, 16], sizes = [1, 8], strides = [1, 1]} : vector<1x32xf32> to vector<1x8xf32>
    %61 = arith.addf %57, %60 : vector<1x8xf32>
    %62 = vector.extract_strided_slice %53 {offsets = [0, 16], sizes = [1, 8], strides = [1, 1]} : vector<1x32xf32> to vector<1x8xf32>
    %63 = arith.addf %59, %62 : vector<1x8xf32>
    %64 = vector.extract_strided_slice %50 {offsets = [0, 24], sizes = [1, 8], strides = [1, 1]} : vector<1x32xf32> to vector<1x8xf32>
    %65 = arith.addf %61, %64 : vector<1x8xf32>
    %66 = vector.extract_strided_slice %53 {offsets = [0, 24], sizes = [1, 8], strides = [1, 1]} : vector<1x32xf32> to vector<1x8xf32>
    %67 = arith.addf %63, %66 : vector<1x8xf32>
    %cst_16 = arith.constant 2.560000e+02 : f32
    %68 = vector.broadcast %cst_16 : f32 to vector<1x8xf32>
    %69 = arith.divf %65, %68 : vector<1x8xf32>
    %cst_17 = arith.constant 2.560000e+02 : f32
    %70 = vector.broadcast %cst_17 : f32 to vector<1x8xf32>
    %71 = arith.divf %67, %70 : vector<1x8xf32>
    %72 = arith.mulf %69, %69 : vector<1x8xf32>
    %73 = arith.subf %71, %72 : vector<1x8xf32>
    %cst_18 = arith.constant 0.000000e+00 : f32
    %74 = vector.broadcast %cst_18 : f32 to vector<1x8xf32>
    %75 = arith.maximumf %73, %74 : vector<1x8xf32>
    %cst_19 = arith.constant 9.99999974E-6 : f32
    %76 = vector.broadcast %cst_19 : f32 to vector<1x8xf32>
    %77 = arith.addf %75, %76 : vector<1x8xf32>
    %78 = math.rsqrt %77 : vector<1x8xf32>
    %79 = tpu.concatenate %78, %78, %78, %78 in 1 : vector<1x8xf32>, vector<1x8xf32>, vector<1x8xf32>, vector<1x8xf32> -> vector<1x32xf32>
    %80 = arith.mulf %69, %78 : vector<1x8xf32>
    %81 = tpu.concatenate %80, %80, %80, %80 in 1 : vector<1x8xf32>, vector<1x8xf32>, vector<1x8xf32>, vector<1x8xf32> -> vector<1x32xf32>
    %82 = vector.broadcast %79 : vector<1x32xf32> to vector<64x32xf32>
    %83 = arith.mulf %48, %82 : vector<64x32xf32>
    %84 = vector.broadcast %81 : vector<1x32xf32> to vector<64x32xf32>
    %85 = arith.subf %83, %84 : vector<64x32xf32>
    %cst_20 = arith.constant 0.000000e+00 : f32
    %86 = vector.broadcast %cst_20 : f32 to vector<64x32xf32>
    %87 = arith.maximumf %85, %86 : vector<64x32xf32>
    %c0_21 = arith.constant 0 : index
    %c0_22 = arith.constant 0 : index
    %c0_23 = arith.constant 0 : index
    %88 = vector.load %arg3[%c0_21, %c0_22, %c0_23] : memref<1x64x32xf32, #tpu.memory_space<vmem>>, vector<1x64x32xf32>
    %89 = vector.shape_cast %88 : vector<1x64x32xf32> to vector<64x32xf32>
    %90 = vector.shape_cast %87 : vector<64x32xf32> to vector<1x64x32xf32>
    tpu.vector_store %arg3[%c0_21, %c0_22, %c0_23], %90 {strides = array<i32>} : memref<1x64x32xf32, #tpu.memory_space<vmem>>, vector<1x64x32xf32>,
    return
  }
  func.func @transform_0(%arg0: i32) -> (i32, i32, i32, i32) {
    %c0_i32 = arith.constant 0 : i32
    %c0_i32_0 = arith.constant 0 : i32
    %c0_i32_1 = arith.constant 0 : i32
    %c0_i32_2 = arith.constant 0 : i32
    return %arg0, %c0_i32, %c0_i32_0, %c0_i32_1 : i32, i32, i32, i32
  }
  func.func @transform_1(%arg0: i32) -> (i32, i32) {
    %c0_i32 = arith.constant 0 : i32
    %c0_i32_0 = arith.constant 0 : i32
    %c0_i32_1 = arith.constant 0 : i32
    return %c0_i32, %c0_i32_0 : i32, i32
  }
  func.func @transform_2(%arg0: i32) -> (i32, i32, i32) {
    %c0_i32 = arith.constant 0 : i32
    %c0_i32_0 = arith.constant 0 : i32
    %c0_i32_1 = arith.constant 0 : i32
    return %arg0, %c0_i32, %c0_i32_0 : i32, i32, i32
  }
}

</mosaic_0001>

<llo_original>
// kernel: unet_up_forward.1
$region0: #{unet_up_forward.1}
  #allocation0 [shape = 'u32[]', space=smem, size = 0x4, offset = 0x4, fixed_abs, tag = 'smem constant byte address 0x4 - core index']
  #allocation1 [shape = 'u32[144,128]{1,0:T(1,128)}', space=vmem, size = 0x12000, scoped, tag = 'internal scratch']
  %s0 = inlined_call_operand.vmem [shape: bf16[2,10,10,8], index: 0, kind: input, shape index: {}]
  %s1 = inlined_call_operand.vmem [shape: bf16[72,32], index: 1, kind: input, shape index: {}]
  %s2 = inlined_call_operand.vmem [shape: f32[2,64,32], index: 2, kind: output, shape index: {}]
  %s3 = sld [smem:[#allocation0]]
  $region41: #{unet_up_forward.1} parent=0
    _
  %s5 = ssub.s32 1, %s3
  %s6 = scalar_select 0, %s5, %s3
  loop: start=0, step=1, limit=4
  $region2: #{unet_up_forward.1} parent=0 // loop_pre_header
    _
  $region3: #{unet_up_forward.1} parent=0 // loop_header
    %s8 = sphi 0, %s12
    %p9 = scmp.ge.s32.totalorder %s8, 4
    %s18 = sphi 0, %s20
    %s21 = sphi 0, %s18
    %s22 = sphi 0, %s21
    %s38 = sphi 0, %s22
    %s42 = sphi 0, %s42
    %s44 = sphi 0, %s42
    %s45 = sphi 0, %s44
    %s59 = sphi 0, %s45
    %s65 = sphi 0, %s67
    %s68 = sphi 0, %s65
    %s69 = sphi 0, %s68
    %s85 = sphi 0, %s69
  $region4: #{unet_up_forward.1} parent=0 // loop_header_branch
    %11 = sbr.rel (%p9) target = $region8
  $region5: #{unet_up_forward.1} parent=0 // loop_body
    %s13 = ssub.s32 %s8, 1
    %s14 = ssub.s32 %s8, 2
    %s15 = sadd.s32 %s8, 1
    %s16 = ssub.s32 %s8, %s15
    %p17 = scmp.eq.s32.totalorder %s16, 0
    %s19 = sadd.s32 %s18, 1
    %s20 = scalar_select %p17, %s18, %s19
    %p23 = pneg %p17
    %p24 = scmp.eq.s32.totalorder %s8, 1
    %p25 = por %p23, %p24
    %p26 = scmp.ne.s32.totalorder %s18, %s21
    %p27 = scmp.eq.s32.totalorder %s8, 0
    %p28 = por %p26, %p27
    %p29 = scmp.ne.s32.totalorder %s18, %s21
    %p30 = scmp.eq.s32.totalorder %s13, 1
    %p31 = por %p29, %p30
    %p32 = scmp.ne.s32.totalorder %s21, %s22
    %p33 = scmp.eq.s32.totalorder %s13, 0
    %p34 = por %p32, %p33
    %p35 = scmp.ne.s32.totalorder %s21, %s22
    %p36 = scmp.eq.s32.totalorder %s14, 1
    %p37 = por %p35, %p36
    %p39 = scmp.ne.s32.totalorder %s22, %s38
    %p40 = scmp.eq.s32.totalorder %s14, 0
    %p41 = por %p39, %p40
    %s43 = sadd.s32 %s42, 1
    %p46 = scmp.eq.s32.totalorder %s8, 1
    %p47 = scmp.ne.s32.totalorder %s42, %s44
    %p48 = scmp.eq.s32.totalorder %s8, 0
    %p49 = por %p47, %p48
    %p50 = scmp.ne.s32.totalorder %s42, %s44
    %p51 = scmp.eq.s32.totalorder %s13, 1
    %p52 = por %p50, %p51
    %p53 = scmp.ne.s32.totalorder %s44, %s45
    %p54 = scmp.eq.s32.totalorder %s13, 0
    %p55 = por %p53, %p54
    %p56 = scmp.ne.s32.totalorder %s44, %s45
    %p57 = scmp.eq.s32.totalorder %s14, 1
    %p58 = por %p56, %p57
    %p60 = scmp.ne.s32.totalorder %s45, %s59
    %p61 = scmp.eq.s32.totalorder %s14, 0
    %p62 = por %p60, %p61
    %s63 = ssub.s32 %s8, %s15
    %p64 = scmp.eq.s32.totalorder %s63, 0
    %s66 = sadd.s32 %s65, 1
    %s67 = scalar_select %p64, %s65, %s66
    %p70 = pneg %p64
    %p71 = scmp.eq.s32.totalorder %s8, 1
    %p72 = por %p70, %p71
    %p73 = scmp.ne.s32.totalorder %s65, %s68
    %p74 = scmp.eq.s32.totalorder %s8, 0
    %p75 = por %p73, %p74
    %p76 = scmp.ne.s32.totalorder %s65, %s68
    %p77 = scmp.eq.s32.totalorder %s13, 1
    %p78 = por %p76, %p77
    %p79 = scmp.ne.s32.totalorder %s68, %s69
    %p80 = scmp.eq.s32.totalorder %s13, 0
    %p81 = por %p79, %p80
    %p82 = scmp.ne.s32.totalorder %s68, %s69
    %p83 = scmp.eq.s32.totalorder %s14, 1
    %p84 = por %p82, %p83
    %p86 = scmp.ne.s32.totalorder %s69, %s85
    %p87 = scmp.eq.s32.totalorder %s14, 0
    %p88 = por %p86, %p87
    %p89 = scmp.le.s32.totalorder 1, %s8
    %p90 = scmp.lt.s32.totalorder %s8, 3
    %p91 = pnand %p89, %p90
    %p92 = pneg %p91
    // Predicated region
    $region9: #{unet_up_forward.1} parent=5 // pred_check
      _
    $region10: #{unet_up_forward.1} parent=5 // pred_check_branch
      %94 = sbr.rel (%p91) target = $region12
    $region11: #{unet_up_forward.1} parent=5 // pred_region
      %s95 = ssub.s32 %s8, 1
      // Predicated region
      $region13: #{unet_up_forward.1} parent=11 // pred_check
        %p96 = pneg %p55
      $region14: #{unet_up_forward.1} parent=11 // pred_check_branch
        %98 = sbr.rel (%p96) target = $region16
      $region15: #{unet_up_forward.1} parent=11 // pred_region
        _
      $region16: #{unet_up_forward.1} parent=11 // pred_fallthru
        _
    $region12: #{unet_up_forward.1} parent=5 // pred_fallthru
      _
    %p99 = scmp.lt.s32.totalorder %s8, 2
    // Predicated region
    $region17: #{unet_up_forward.1} parent=5 // pred_check
      %p100 = pneg %p99
    $region18: #{unet_up_forward.1} parent=5 // pred_check_branch
      %102 = sbr.rel (%p100) target = $region20
    $region19: #{unet_up_forward.1} parent=5 // pred_region
      // Predicated region
      $region21: #{unet_up_forward.1} parent=19 // pred_check
        %p103 = pneg %p28
      $region22: #{unet_up_forward.1} parent=19 // pred_check_branch
        %105 = sbr.rel (%p103) target = $region24
      $region23: #{unet_up_forward.1} parent=19 // pred_region
        %p106 = scmp.lt.s32.totalorder %s8, 1
        %s107 = scalar_select %p106, %s8, 1
        %s108 = smul.addr %s107, 20
        %s109 = smul.addr %s108, 4
        %s110 = scalar_lea.vmem %s0, %s109
      $region24: #{unet_up_forward.1} parent=19 // pred_fallthru
        _
    $region20: #{unet_up_forward.1} parent=5 // pred_fallthru
      _
    %p111 = scmp.le.s32.totalorder 1, %s8
    %p112 = scmp.lt.s32.totalorder %s8, 3
    %p113 = pnand %p111, %p112
    %p114 = pneg %p113
    // Predicated region
    $region25: #{unet_up_forward.1} parent=5 // pred_check
      _
    $region26: #{unet_up_forward.1} parent=5 // pred_check_branch
      %116 = sbr.rel (%p113) target = $region28
    $region27: #{unet_up_forward.1} parent=5 // pred_region
      %s117 = ssub.s32 %s8, 1
      %p118 = scmp.lt.s32.totalorder %s13, 1
      %s119 = scalar_select %p118, %s13, 1
      %s120 = smul.addr %s119, 20
      %s121 = smul.addr %s120, 4
      %s122 = scalar_lea.vmem %s0, %s121
      %p123 = pneg %p34
      %p124 = pneg %p31
      %p125 = pneg %p55
      %p126 = pneg %p52
      %p127 = pneg %p81
      %p128 = pneg %p78
      %p129 = scmp.lt.s32.totalorder %s13, 1
      %s130 = scalar_select %p129, %s13, 1
      %s131 = smul.addr %s130, 8
      %s132 = smul.addr %s131, 8
      %s133 = scalar_lea.vmem %s2, %s132
      %p134 = scmp.lt.s32.totalorder %s13, 1
      %s135 = scalar_select %p134, %s13, 1
      %s136 = smul.addr %s135, 20
      %s137 = smul.addr %s136, 4
      %s138 = scalar_lea.vmem %s0, %s137
      %p139 = scmp.lt.s32.totalorder %s13, 1
      %s140 = scalar_select %p139, %s13, 1
      %s141 = smul.addr %s140, 8
      %s142 = smul.addr %s141, 8
      %s143 = scalar_lea.vmem %s2, %s142
      %v145 = vld [vmem:[%s138] sm:$0xf]
      %v146 = vld [vmem:[%s138 + $0x4] sm:$0x1]
      %v147 = vld [vmem:[%s138 + $0x8] sm:$0xf]
      %v148 = vld [vmem:[%s138 + $0xc] sm:$0x1]
      %v149 = vld [vmem:[%s138 + $0x10] sm:$0xf]
      %v150 = vld [vmem:[%s138 + $0x14] sm:$0x1]
      %v151 = vld [vmem:[%s138 + $0x18] sm:$0xf]
      %v152 = vld [vmem:[%s138 + $0x1c] sm:$0x1]
      %v153 = vld [vmem:[%s138 + $0x20] sm:$0xf]
      %v154 = vld [vmem:[%s138 + $0x24] sm:$0x1]
      %v155 = vld [vmem:[%s138 + $0x28] sm:$0xf]
      %v156 = vld [vmem:[%s138 + $0x2c] sm:$0x1]
      %v157 = vld [vmem:[%s138 + $0x30] sm:$0xf]
      %v158 = vld [vmem:[%s138 + $0x34] sm:$0x1]
      %v159 = vld [vmem:[%s138 + $0x38] sm:$0xf]
      %v160 = vld [vmem:[%s138 + $0x3c] sm:$0x1]
      %v161 = vld [vmem:[%s138 + $0x40] sm:$0xf]
      %v162 = vld [vmem:[%s138 + $0x44] sm:$0x1]
      %v163 = vld [vmem:[%s138 + $0x48] sm:$0xf]
      %v164 = vld [vmem:[%s138 + $0x4c] sm:$0x1]
      %v165 = vld [vmem:[%s1] sm:$0xf]
      %v166 = vld [vmem:[%s1 + $0x4] sm:$0xf]
      %v167 = vld [vmem:[%s1 + $0x8] sm:$0xf]
      %v168 = vld [vmem:[%s1 + $0xc] sm:$0xf]
      %v169 = vld [vmem:[%s1 + $0x10] sm:$0xf]
      %v170 = vld [vmem:[%s1 + $0x14] sm:$0xf]
      %v171 = vld [vmem:[%s1 + $0x18] sm:$0xf]
      %v172 = vld [vmem:[%s1 + $0x1c] sm:$0xf]
      %v173 = vld [vmem:[%s1 + $0x20] sm:$0xf]
      %vm174 = vsmask.f32 3328
      %vm175 = vsmask.f32 7440
      %vm176 = vmor %vm174, %vm175
      %v178 = vshrl.u32 %v145, 16
      %v180 = vrot.slane %v178, 4
      %v181 = vshll.u32 %v145, 16
      %v183 = vrot.slane %v181, 5
      %v184 = vor.u32 %v180, %v183
      %v185 = vrot.slane %v184, 4
      %v187 = vshll.u32 %v146, 16
      %v189 = vrot.slane %v187, 5
      %v190 = vsel %vm176, %v185, %v189
      %v192 = vshrl.u32 %v147, 16
      %v194 = vrot.slane %v192, 4
      %v195 = vshll.u32 %v147, 16
      %v197 = vrot.slane %v195, 5
      %v198 = vor.u32 %v194, %v197
      %v199 = vrot.slane %v198, 4
      %v201 = vshll.u32 %v148, 16
      %v203 = vrot.slane %v201, 5
      %v204 = vsel %vm176, %v199, %v203
      %v206 = vshrl.u32 %v149, 16
      %v208 = vrot.slane %v206, 4
      %v209 = vshll.u32 %v149, 16
      %v211 = vrot.slane %v209, 5
      %v212 = vor.u32 %v208, %v211
      %v213 = vrot.slane %v212, 4
      %v215 = vshll.u32 %v150, 16
      %v217 = vrot.slane %v215, 5
      %v218 = vsel %vm176, %v213, %v217
      %v220 = vshrl.u32 %v151, 16
      %v222 = vrot.slane %v220, 4
      %v223 = vshll.u32 %v151, 16
      %v225 = vrot.slane %v223, 5
      %v226 = vor.u32 %v222, %v225
      %v227 = vrot.slane %v226, 4
      %v229 = vshll.u32 %v152, 16
      %v231 = vrot.slane %v229, 5
      %v232 = vsel %vm176, %v227, %v231
      %v234 = vshrl.u32 %v153, 16
      %v236 = vrot.slane %v234, 4
      %v237 = vshll.u32 %v153, 16
      %v239 = vrot.slane %v237, 5
      %v240 = vor.u32 %v236, %v239
      %v241 = vrot.slane %v240, 4
      %v243 = vshll.u32 %v154, 16
      %v245 = vrot.slane %v243, 5
      %v246 = vsel %vm176, %v241, %v245
      %v248 = vshrl.u32 %v155, 16
      %v250 = vrot.slane %v248, 4
      %v251 = vshll.u32 %v155, 16
      %v253 = vrot.slane %v251, 5
      %v254 = vor.u32 %v250, %v253
      %v255 = vrot.slane %v254, 4
      %v257 = vshll.u32 %v156, 16
      %v259 = vrot.slane %v257, 5
      %v260 = vsel %vm176, %v255, %v259
      %v262 = vshrl.u32 %v157, 16
      %v264 = vrot.slane %v262, 4
      %v265 = vshll.u32 %v157, 16
      %v267 = vrot.slane %v265, 5
      %v268 = vor.u32 %v264, %v267
      %v269 = vrot.slane %v268, 4
      %v271 = vshll.u32 %v158, 16
      %v273 = vrot.slane %v271, 5
      %v274 = vsel %vm176, %v269, %v273
      %v276 = vshrl.u32 %v159, 16
      %v278 = vrot.slane %v276, 4
      %v279 = vshll.u32 %v159, 16
      %v281 = vrot.slane %v279, 5
      %v282 = vor.u32 %v278, %v281
      %v283 = vrot.slane %v282, 4
      %v285 = vshll.u32 %v160, 16
      %v287 = vrot.slane %v285, 5
      %v288 = vsel %vm176, %v283, %v287
      %v289 = vunpack.c.l.b16 %v190
      %v290 = vunpack.c.l.b16 %v204
      %v291 = vunpack.c.l.b16 %v218
      %v292 = vunpack.c.l.b16 %v232
      %v293 = vunpack.c.l.b16 %v246
      %v294 = vunpack.c.l.b16 %v260
      %v295 = vunpack.c.l.b16 %v274
      %v296 = vunpack.c.l.b16 %v288
      %v297 = vpack.c.b16 %v290, %v289
      %v298 = vpack.c.b16 %v292, %v291
      %v299 = vpack.c.b16 %v294, %v293
      %v300 = vpack.c.b16 %v296, %v295
      %vm301 = vcmask 64512
      %v303 = vsel %vm301, %v297, 0
      %v306 = vsel %vm301, %v298, 0
      %v309 = vsel %vm301, %v299, 0
      %v312 = vsel %vm301, %v300, 0
      %vm314 = vcmask 1043456
      %v316 = vsel %vm314, %v166, 0
      %318 = vmatprep.subr.bf16.mxu0 0
      %319 = vmatpush1.bf16.msra.mxu0 %v316
      %320 = vmatprep.subr.bf16.mxu0 0
      %321 = vmatpush1.bf16.msra.mxu0 0
      %322 = vmatprep.subr.bf16.mxu0 0
      %323 = vmatpush1.bf16.msra.mxu0 0
      %324 = vmatprep.subr.bf16.mxu0 0
      %325 = vmatpush1.bf16.msra.mxu0 0
      %326 = vmatprep.subr.bf16.mxu0 0
      %327 = vmatpush1.bf16.msra.mxu0 0
      %328 = vmatprep.subr.bf16.mxu0 0
      %329 = vmatpush1.bf16.msra.mxu0 0
      %330 = vmatprep.subr.bf16.mxu0 0
      %331 = vmatpush1.bf16.msra.mxu0 0
      %332 = vmatprep.subr.bf16.mxu0 0
      %333 = vmatpush1.bf16.msra.mxu0 0
      %334 = vmatprep.subr.bf16.mxu0 0
      %335 = vmatpush1.bf16.msra.mxu0 0
      %336 = vmatprep.subr.bf16.mxu0 0
      %337 = vmatpush1.bf16.msra.mxu0 0
      %338 = vmatprep.subr.bf16.mxu0 0
      %339 = vmatpush1.bf16.msra.mxu0 0
      %340 = vmatprep.subr.bf16.mxu0 0
      %341 = vmatpush1.bf16.msra.mxu0 0
      %342 = vmatprep.subr.bf16.mxu0 0
      %343 = vmatpush1.bf16.msra.mxu0 0
      %344 = vmatprep.subr.bf16.mxu0 0
      %345 = vmatpush1.bf16.msra.mxu0 0
      %346 = vmatprep.subr.bf16.mxu0 0
      %347 = vmatpush1.bf16.msra.mxu0 0
      %348 = vmatprep.subr.bf16.mxu0 0
      %349 = vmatpush1.bf16.msra.mxu0 0
      %350 = vmatprep.mubr.bf16.mxu0 0
      %351 = vmatmul.mubr.bf16.gmra.mrb[0].mxu0 %v303
      %v352 = vpop.f32.mrb[0].mxu0
      %v353 = vadd.f32 0.0, %v352
      %v354 = vpop.f32.mrb[0].mxu0
      %v355 = vpop.f32.mrb[0].mxu0
      %v356 = vadd.f32 0.0, %v355
      %v357 = vpop.f32.mrb[0].mxu0
      %358 = vmatprep.mubr.bf16.mxu0 0
      %359 = vmatmul.mubr.bf16.gmra.mrb[0].mxu0 %v306
      %v360 = vpop.f32.mrb[0].mxu0
      %v361 = vadd.f32 0.0, %v360
      %v362 = vpop.f32.mrb[0].mxu0
      %v363 = vpop.f32.mrb[0].mxu0
      %v364 = vadd.f32 0.0, %v363
      %v365 = vpop.f32.mrb[0].mxu0
      %366 = vmatprep.mubr.bf16.mxu0 0
      %367 = vmatmul.mubr.bf16.gmra.mrb[0].mxu0 %v309
      %v368 = vpop.f32.mrb[0].mxu0
      %v369 = vadd.f32 0.0, %v368
      %v370 = vpop.f32.mrb[0].mxu0
      %v371 = vpop.f32.mrb[0].mxu0
      %v372 = vadd.f32 0.0, %v371
      %v373 = vpop.f32.mrb[0].mxu0
      %374 = vmatprep.mubr.bf16.mxu0 0
      %375 = vmatmul.mubr.bf16.gmra.mrb[0].mxu0 %v312
      %v376 = vpop.f32.mrb[0].mxu0
      %v377 = vadd.f32 0.0, %v376
      %v378 = vpop.f32.mrb[0].mxu0
      %v379 = vpop.f32.mrb[0].mxu0
      %v380 = vadd.f32 0.0, %v379
      %v381 = vpop.f32.mrb[0].mxu0
      %382 = vdwg.mxu0
      %v391 = vunpack.c.l.b16 %v145
      %v392 = vunpack.c.l.b16 %v147
      %v393 = vunpack.c.l.b16 %v149
      %v394 = vunpack.c.l.b16 %v151
      %v395 = vunpack.c.l.b16 %v153
      %v396 = vunpack.c.l.b16 %v155
      %v397 = vunpack.c.l.b16 %v157
      %v398 = vunpack.c.l.b16 %v159
      %v399 = vpack.c.b16 %v392, %v391
      %v400 = vpack.c.b16 %v394, %v393
      %v401 = vpack.c.b16 %v396, %v395
      %v402 = vpack.c.b16 %v398, %v397
      %v404 = vsel %vm301, %v399, 0
      %v407 = vsel %vm301, %v400, 0
      %v410 = vsel %vm301, %v401, 0
      %v413 = vsel %vm301, %v402, 0
      %v416 = vsel %vm314, %v165, 0
      %418 = vmatprep.subr.bf16.mxu0 0
      %419 = vmatpush1.bf16.msra.mxu0 %v416
      %420 = vmatprep.subr.bf16.mxu0 0
      %421 = vmatpush1.bf16.msra.mxu0 0
      %422 = vmatprep.subr.bf16.mxu0 0
      %423 = vmatpush1.bf16.msra.mxu0 0
      %424 = vmatprep.subr.bf16.mxu0 0
      %425 = vmatpush1.bf16.msra.mxu0 0
      %426 = vmatprep.subr.bf16.mxu0 0
      %427 = vmatpush1.bf16.msra.mxu0 0
      %428 = vmatprep.subr.bf16.mxu0 0
      %429 = vmatpush1.bf16.msra.mxu0 0
      %430 = vmatprep.subr.bf16.mxu0 0
      %431 = vmatpush1.bf16.msra.mxu0 0
      %432 = vmatprep.subr.bf16.mxu0 0
      %433 = vmatpush1.bf16.msra.mxu0 0
      %434 = vmatprep.subr.bf16.mxu0 0
      %435 = vmatpush1.bf16.msra.mxu0 0
      %436 = vmatprep.subr.bf16.mxu0 0
      %437 = vmatpush1.bf16.msra.mxu0 0
      %438 = vmatprep.subr.bf16.mxu0 0
      %439 = vmatpush1.bf16.msra.mxu0 0
      %440 = vmatprep.subr.bf16.mxu0 0
      %441 = vmatpush1.bf16.msra.mxu0 0
      %442 = vmatprep.subr.bf16.mxu0 0
      %443 = vmatpush1.bf16.msra.mxu0 0
      %444 = vmatprep.subr.bf16.mxu0 0
      %445 = vmatpush1.bf16.msra.mxu0 0
      %446 = vmatprep.subr.bf16.mxu0 0
      %447 = vmatpush1.bf16.msra.mxu0 0
      %448 = vmatprep.subr.bf16.mxu0 0
      %449 = vmatpush1.bf16.msra.mxu0 0
      %450 = vmatprep.mubr.bf16.mxu0 0
      %451 = vmatmul.mubr.bf16.gmra.mrb[0].mxu0 %v404
      %v452 = vpop.f32.mrb[0].mxu0
      %v453 = vadd.f32 %v353, %v452
      %v454 = vpop.f32.mrb[0].mxu0
      %v455 = vpop.f32.mrb[0].mxu0
      %v456 = vadd.f32 %v356, %v455
      %v457 = vpop.f32.mrb[0].mxu0
      %458 = vmatprep.mubr.bf16.mxu0 0
      %459 = vmatmul.mubr.bf16.gmra.mrb[0].mxu0 %v407
      %v460 = vpop.f32.mrb[0].mxu0
      %v461 = vadd.f32 %v361, %v460
      %v462 = vpop.f32.mrb[0].mxu0
      %v463 = vpop.f32.mrb[0].mxu0
      %v464 = vadd.f32 %v364, %v463
      %v465 = vpop.f32.mrb[0].mxu0
      %466 = vmatprep.mubr.bf16.mxu0 0
      %467 = vmatmul.mubr.bf16.gmra.mrb[0].mxu0 %v410
      %v468 = vpop.f32.mrb[0].mxu0
      %v469 = vadd.f32 %v369, %v468
      %v470 = vpop.f32.mrb[0].mxu0
      %v471 = vpop.f32.mrb[0].mxu0
      %v472 = vadd.f32 %v372, %v471
      %v473 = vpop.f32.mrb[0].mxu0
      %474 = vmatprep.mubr.bf16.mxu0 0
      %475 = vmatmul.mubr.bf16.gmra.mrb[0].mxu0 %v413
      %v476 = vpop.f32.mrb[0].mxu0
      %v477 = vadd.f32 %v377, %v476
      %v478 = vpop.f32.mrb[0].mxu0
      %v479 = vpop.f32.mrb[0].mxu0
      %v480 = vadd.f32 %v380, %v479
      %v481 = vpop.f32.mrb[0].mxu0
      %482 = vdwg.mxu0
      %vm491 = vcmask 1042432
      %vm492 = vcmask 1046532
      %vm493 = vmor %vm491, %vm492
      %v494 = vrot.slane %v145, 5
      %v495 = vrot.slane %v494, 4
      %v496 = vrot.slane %v146, 5
      %v497 = vsel %vm493, %v495, %v496
      %v498 = vrot.slane %v147, 5
      %v499 = vrot.slane %v498, 4
      %v500 = vrot.slane %v148, 5
      %v501 = vsel %vm493, %v499, %v500
      %v502 = vrot.slane %v149, 5
      %v503 = vrot.slane %v502, 4
      %v504 = vrot.slane %v150, 5
      %v505 = vsel %vm493, %v503, %v504
      %v506 = vrot.slane %v151, 5
      %v507 = vrot.slane %v506, 4
      %v508 = vrot.slane %v152, 5
      %v509 = vsel %vm493, %v507, %v508
      %v510 = vrot.slane %v153, 5
      %v511 = vrot.slane %v510, 4
      %v512 = vrot.slane %v154, 5
      %v513 = vsel %vm493, %v511, %v512
      %v514 = vrot.slane %v155, 5
      %v515 = vrot.slane %v514, 4
      %v516 = vrot.slane %v156, 5
      %v517 = vsel %vm493, %v515, %v516
      %v518 = vrot.slane %v157, 5
      %v519 = vrot.slane %v518, 4
      %v520 = vrot.slane %v158, 5
      %v521 = vsel %vm493, %v519, %v520
      %v522 = vrot.slane %v159, 5
      %v523 = vrot.slane %v522, 4
      %v524 = vrot.slane %v160, 5
      %v525 = vsel %vm493, %v523, %v524
      %v526 = vunpack.c.l.b16 %v497
      %v527 = vunpack.c.l.b16 %v501
      %v528 = vunpack.c.l.b16 %v505
      %v529 = vunpack.c.l.b16 %v509
      %v530 = vunpack.c.l.b16 %v513
      %v531 = vunpack.c.l.b16 %v517
      %v532 = vunpack.c.l.b16 %v521
      %v533 = vunpack.c.l.b16 %v525
      %v534 = vpack.c.b16 %v527, %v526
      %v535 = vpack.c.b16 %v529, %v528
      %v536 = vpack.c.b16 %v531, %v530
      %v537 = vpack.c.b16 %v533, %v532
      %v539 = vsel %vm301, %v534, 0
      %v542 = vsel %vm301, %v535, 0
      %v545 = vsel %vm301, %v536, 0
      %v548 = vsel %vm301, %v537, 0
      %v551 = vsel %vm314, %v167, 0
      %553 = vmatprep.subr.bf16.mxu0 0
      %554 = vmatpush1.bf16.msra.mxu0 %v551
      %555 = vmatprep.subr.bf16.mxu0 0
      %556 = vmatpush1.bf16.msra.mxu0 0
      %557 = vmatprep.subr.bf16.mxu0 0
      %558 = vmatpush1.bf16.msra.mxu0 0
      %559 = vmatprep.subr.bf16.mxu0 0
      %560 = vmatpush1.bf16.msra.mxu0 0
      %561 = vmatprep.subr.bf16.mxu0 0
      %562 = vmatpush1.bf16.msra.mxu0 0
      %563 = vmatprep.subr.bf16.mxu0 0
      %564 = vmatpush1.bf16.msra.mxu0 0
      %565 = vmatprep.subr.bf16.mxu0 0
      %566 = vmatpush1.bf16.msra.mxu0 0
      %567 = vmatprep.subr.bf16.mxu0 0
      %568 = vmatpush1.bf16.msra.mxu0 0
      %569 = vmatprep.subr.bf16.mxu0 0
      %570 = vmatpush1.bf16.msra.mxu0 0
      %571 = vmatprep.subr.bf16.mxu0 0
      %572 = vmatpush1.bf16.msra.mxu0 0
      %573 = vmatprep.subr.bf16.mxu0 0
      %574 = vmatpush1.bf16.msra.mxu0 0
      %575 = vmatprep.subr.bf16.mxu0 0
      %576 = vmatpush1.bf16.msra.mxu0 0
      %577 = vmatprep.subr.bf16.mxu0 0
      %578 = vmatpush1.bf16.msra.mxu0 0
      %579 = vmatprep.subr.bf16.mxu0 0
      %580 = vmatpush1.bf16.msra.mxu0 0
      %581 = vmatprep.subr.bf16.mxu0 0
      %582 = vmatpush1.bf16.msra.mxu0 0
      %583 = vmatprep.subr.bf16.mxu0 0
      %584 = vmatpush1.bf16.msra.mxu0 0
      %585 = vmatprep.mubr.bf16.mxu0 0
      %586 = vmatmul.mubr.bf16.gmra.mrb[0].mxu0 %v539
      %v587 = vpop.f32.mrb[0].mxu0
      %v588 = vadd.f32 0.0, %v587
      %v589 = vpop.f32.mrb[0].mxu0
      %v590 = vpop.f32.mrb[0].mxu0
      %v591 = vadd.f32 0.0, %v590
      %v592 = vpop.f32.mrb[0].mxu0
      %593 = vmatprep.mubr.bf16.mxu0 0
      %594 = vmatmul.mubr.bf16.gmra.mrb[0].mxu0 %v542
      %v595 = vpop.f32.mrb[0].mxu0
      %v596 = vadd.f32 0.0, %v595
      %v597 = vpop.f32.mrb[0].mxu0
      %v598 = vpop.f32.mrb[0].mxu0
      %v599 = vadd.f32 0.0, %v598
      %v600 = vpop.f32.mrb[0].mxu0
      %601 = vmatprep.mubr.bf16.mxu0 0
      %602 = vmatmul.mubr.bf16.gmra.mrb[0].mxu0 %v545
      %v603 = vpop.f32.mrb[0].mxu0
      %v604 = vadd.f32 0.0, %v603
      %v605 = vpop.f32.mrb[0].mxu0
      %v606 = vpop.f32.mrb[0].mxu0
      %v607 = vadd.f32 0.0, %v606
      %v608 = vpop.f32.mrb[0].mxu0
      %609 = vmatprep.mubr.bf16.mxu0 0
      %610 = vmatmul.mubr.bf16.gmra.mrb[0].mxu0 %v548
      %v611 = vpop.f32.mrb[0].mxu0
      %v612 = vadd.f32 0.0, %v611
      %v613 = vpop.f32.mrb[0].mxu0
      %v614 = vpop.f32.mrb[0].mxu0
      %v615 = vadd.f32 0.0, %v614
      %v616 = vpop.f32.mrb[0].mxu0
      %617 = vdwg.mxu0
      %v618 = vadd.f32 %v453, %v588
      %v619 = vadd.f32 %v456, %v591
      %v620 = vadd.f32 %v461, %v596
      %v621 = vadd.f32 %v464, %v599
      %v622 = vadd.f32 %v469, %v604
      %v623 = vadd.f32 %v472, %v607
      %v624 = vadd.f32 %v477, %v612
      %v625 = vadd.f32 %v480, %v615
      %v627 = vunpack.c.l.b16 %v161
      %v628 = vpack.c.b16 %v393, %v392
      %v629 = vpack.c.b16 %v395, %v394
      %v630 = vpack.c.b16 %v397, %v396
      %v631 = vpack.c.b16 %v627, %v398
      %v633 = vsel %vm301, %v628, 0
      %v636 = vsel %vm301, %v629, 0
      %v639 = vsel %vm301, %v630, 0
      %v642 = vsel %vm301, %v631, 0
      %v645 = vsel %vm314, %v168, 0
      %647 = vmatprep.subr.bf16.mxu0 0
      %648 = vmatpush1.bf16.msra.mxu0 %v645
      %649 = vmatprep.subr.bf16.mxu0 0
      %650 = vmatpush1.bf16.msra.mxu0 0
      %651 = vmatprep.subr.bf16.mxu0 0
      %652 = vmatpush1.bf16.msra.mxu0 0
      %653 = vmatprep.subr.bf16.mxu0 0
      %654 = vmatpush1.bf16.msra.mxu0 0
      %655 = vmatprep.subr.bf16.mxu0 0
      %656 = vmatpush1.bf16.msra.mxu0 0
      %657 = vmatprep.subr.bf16.mxu0 0
      %658 = vmatpush1.bf16.msra.mxu0 0
      %659 = vmatprep.subr.bf16.mxu0 0
      %660 = vmatpush1.bf16.msra.mxu0 0
      %661 = vmatprep.subr.bf16.mxu0 0
      %662 = vmatpush1.bf16.msra.mxu0 0
      %663 = vmatprep.subr.bf16.mxu0 0
      %664 = vmatpush1.bf16.msra.mxu0 0
      %665 = vmatprep.subr.bf16.mxu0 0
      %666 = vmatpush1.bf16.msra.mxu0 0
      %667 = vmatprep.subr.bf16.mxu0 0
      %668 = vmatpush1.bf16.msra.mxu0 0
      %669 = vmatprep.subr.bf16.mxu0 0
      %670 = vmatpush1.bf16.msra.mxu0 0
      %671 = vmatprep.subr.bf16.mxu0 0
      %672 = vmatpush1.bf16.msra.mxu0 0
      %673 = vmatprep.subr.bf16.mxu0 0
      %674 = vmatpush1.bf16.msra.mxu0 0
      %675 = vmatprep.subr.bf16.mxu0 0
      %676 = vmatpush1.bf16.msra.mxu0 0
      %677 = vmatprep.subr.bf16.mxu0 0
      %678 = vmatpush1.bf16.msra.mxu0 0
      %679 = vmatprep.mubr.bf16.mxu0 0
      %680 = vmatmul.mubr.bf16.gmra.mrb[0].mxu0 %v633
      %v681 = vpop.f32.mrb[0].mxu0
      %v682 = vadd.f32 0.0, %v681
      %v683 = vpop.f32.mrb[0].mxu0
      %v684 = vpop.f32.mrb[0].mxu0
      %v685 = vadd.f32 0.0, %v684
      %v686 = vpop.f32.mrb[0].mxu0
      %687 = vmatprep.mubr.bf16.mxu0 0
      %688 = vmatmul.mubr.bf16.gmra.mrb[0].mxu0 %v636
      %v689 = vpop.f32.mrb[0].mxu0
      %v690 = vadd.f32 0.0, %v689
      %v691 = vpop.f32.mrb[0].mxu0
      %v692 = vpop.f32.mrb[0].mxu0
      %v693 = vadd.f32 0.0, %v692
      %v694 = vpop.f32.mrb[0].mxu0
      %695 = vmatprep.mubr.bf16.mxu0 0
      %696 = vmatmul.mubr.bf16.gmra.mrb[0].mxu0 %v639
      %v697 = vpop.f32.mrb[0].mxu0
      %v698 = vadd.f32 0.0, %v697
      %v699 = vpop.f32.mrb[0].mxu0
      %v700 = vpop.f32.mrb[0].mxu0
      %v701 = vadd.f32 0.0, %v700
      %v702 = vpop.f32.mrb[0].mxu0
      %703 = vmatprep.mubr.bf16.mxu0 0
      %704 = vmatmul.mubr.bf16.gmra.mrb[0].mxu0 %v642
      %v705 = vpop.f32.mrb[0].mxu0
      %v706 = vadd.f32 0.0, %v705
      %v707 = vpop.f32.mrb[0].mxu0
      %v708 = vpop.f32.mrb[0].mxu0
      %v709 = vadd.f32 0.0, %v708
      %v710 = vpop.f32.mrb[0].mxu0
      %711 = vdwg.mxu0
      %v712 = vadd.f32 %v618, %v682
      %v713 = vadd.f32 %v619, %v685
      %v714 = vadd.f32 %v620, %v690
      %v715 = vadd.f32 %v621, %v693
      %v716 = vadd.f32 %v622, %v698
      %v717 = vadd.f32 %v623, %v701
      %v718 = vadd.f32 %v624, %v706
      %v719 = vadd.f32 %v625, %v709
      %v721 = vshrl.u32 %v161, 16
      %v723 = vrot.slane %v721, 4
      %v724 = vshll.u32 %v161, 16
      %v726 = vrot.slane %v724, 5
      %v727 = vor.u32 %v723, %v726
      %v728 = vrot.slane %v727, 4
      %v730 = vshll.u32 %v162, 16
      %v732 = vrot.slane %v730, 5
      %v733 = vsel %vm176, %v728, %v732
      %v734 = vunpack.c.l.b16 %v733
      %v735 = vpack.c.b16 %v291, %v290
      %v736 = vpack.c.b16 %v293, %v292
      %v737 = vpack.c.b16 %v295, %v294
      %v738 = vpack.c.b16 %v734, %v296
      %v740 = vsel %vm301, %v735, 0
      %v743 = vsel %vm301, %v736, 0
      %v746 = vsel %vm301, %v737, 0
      %v749 = vsel %vm301, %v738, 0
      %v752 = vsel %vm314, %v169, 0
      %754 = vmatprep.subr.bf16.mxu0 0
      %755 = vmatpush1.bf16.msra.mxu0 %v752
      %756 = vmatprep.subr.bf16.mxu0 0
      %757 = vmatpush1.bf16.msra.mxu0 0
      %758 = vmatprep.subr.bf16.mxu0 0
      %759 = vmatpush1.bf16.msra.mxu0 0
      %760 = vmatprep.subr.bf16.mxu0 0
      %761 = vmatpush1.bf16.msra.mxu0 0
      %762 = vmatprep.subr.bf16.mxu0 0
      %763 = vmatpush1.bf16.msra.mxu0 0
      %764 = vmatprep.subr.bf16.mxu0 0
      %765 = vmatpush1.bf16.msra.mxu0 0
      %766 = vmatprep.subr.bf16.mxu0 0
      %767 = vmatpush1.bf16.msra.mxu0 0
      %768 = vmatprep.subr.bf16.mxu0 0
      %769 = vmatpush1.bf16.msra.mxu0 0
      %770 = vmatprep.subr.bf16.mxu0 0
      %771 = vmatpush1.bf16.msra.mxu0 0
      %772 = vmatprep.subr.bf16.mxu0 0
      %773 = vmatpush1.bf16.msra.mxu0 0
      %774 = vmatprep.subr.bf16.mxu0 0
      %775 = vmatpush1.bf16.msra.mxu0 0
      %776 = vmatprep.subr.bf16.mxu0 0
      %777 = vmatpush1.bf16.msra.mxu0 0
      %778 = vmatprep.subr.bf16.mxu0 0
      %779 = vmatpush1.bf16.msra.mxu0 0
      %780 = vmatprep.subr.bf16.mxu0 0
      %781 = vmatpush1.bf16.msra.mxu0 0
      %782 = vmatprep.subr.bf16.mxu0 0
      %783 = vmatpush1.bf16.msra.mxu0 0
      %784 = vmatprep.subr.bf16.mxu0 0
      %785 = vmatpush1.bf16.msra.mxu0 0
      %786 = vmatprep.mubr.bf16.mxu0 0
      %787 = vmatmul.mubr.bf16.gmra.mrb[0].mxu0 %v740
      %v788 = vpop.f32.mrb[0].mxu0
      %v789 = vadd.f32 0.0, %v788
      %v790 = vpop.f32.mrb[0].mxu0
      %v791 = vpop.f32.mrb[0].mxu0
      %v792 = vadd.f32 0.0, %v791
      %v793 = vpop.f32.mrb[0].mxu0
      %794 = vmatprep.mubr.bf16.mxu0 0
      %795 = vmatmul.mubr.bf16.gmra.mrb[0].mxu0 %v743
      %v796 = vpop.f32.mrb[0].mxu0
      %v797 = vadd.f32 0.0, %v796
      %v798 = vpop.f32.mrb[0].mxu0
      %v799 = vpop.f32.mrb[0].mxu0
      %v800 = vadd.f32 0.0, %v799
      %v801 = vpop.f32.mrb[0].mxu0
      %802 = vmatprep.mubr.bf16.mxu0 0
      %803 = vmatmul.mubr.bf16.gmra.mrb[0].mxu0 %v746
      %v804 = vpop.f32.mrb[0].mxu0
      %v805 = vadd.f32 0.0, %v804
      %v806 = vpop.f32.mrb[0].mxu0
      %v807 = vpop.f32.mrb[0].mxu0
      %v808 = vadd.f32 0.0, %v807
      %v809 = vpop.f32.mrb[0].mxu0
      %810 = vmatprep.mubr.bf16.mxu0 0
      %811 = vmatmul.mubr.bf16.gmra.mrb[0].mxu0 %v749
      %v812 = vpop.f32.mrb[0].mxu0
      %v813 = vadd.f32 0.0, %v812
      %v814 = vpop.f32.mrb[0].mxu0
      %v815 = vpop.f32.mrb[0].mxu0
      %v816 = vadd.f32 0.0, %v815
      %v817 = vpop.f32.mrb[0].mxu0
      %818 = vdwg.mxu0
      %v819 = vadd.f32 %v712, %v789
      %v820 = vadd.f32 %v713, %v792
      %v821 = vadd.f32 %v714, %v797
      %v822 = vadd.f32 %v715, %v800
      %v823 = vadd.f32 %v716, %v805
      %v824 = vadd.f32 %v717, %v808
      %v825 = vadd.f32 %v718, %v813
      %v826 = vadd.f32 %v719, %v816
      %v828 = vrot.slane %v161, 5
      %v829 = vrot.slane %v828, 4
      %v830 = vrot.slane %v162, 5
      %v831 = vsel %vm493, %v829, %v830
      %v832 = vunpack.c.l.b16 %v831
      %v833 = vpack.c.b16 %v528, %v527
      %v834 = vpack.c.b16 %v530, %v529
      %v835 = vpack.c.b16 %v532, %v531
      %v836 = vpack.c.b16 %v832, %v533
      %v838 = vsel %vm301, %v833, 0
      %v841 = vsel %vm301, %v834, 0
      %v844 = vsel %vm301, %v835, 0
      %v847 = vsel %vm301, %v836, 0
      %v850 = vsel %vm314, %v170, 0
      %852 = vmatprep.subr.bf16.mxu0 0
      %853 = vmatpush1.bf16.msra.mxu0 %v850
      %854 = vmatprep.subr.bf16.mxu0 0
      %855 = vmatpush1.bf16.msra.mxu0 0
      %856 = vmatprep.subr.bf16.mxu0 0
      %857 = vmatpush1.bf16.msra.mxu0 0
      %858 = vmatprep.subr.bf16.mxu0 0
      %859 = vmatpush1.bf16.msra.mxu0 0
      %860 = vmatprep.subr.bf16.mxu0 0
      %861 = vmatpush1.bf16.msra.mxu0 0
      %862 = vmatprep.subr.bf16.mxu0 0
      %863 = vmatpush1.bf16.msra.mxu0 0
      %864 = vmatprep.subr.bf16.mxu0 0
      %865 = vmatpush1.bf16.msra.mxu0 0
      %866 = vmatprep.subr.bf16.mxu0 0
      %867 = vmatpush1.bf16.msra.mxu0 0
      %868 = vmatprep.subr.bf16.mxu0 0
      %869 = vmatpush1.bf16.msra.mxu0 0
      %870 = vmatprep.subr.bf16.mxu0 0
      %871 = vmatpush1.bf16.msra.mxu0 0
      %872 = vmatprep.subr.bf16.mxu0 0
      %873 = vmatpush1.bf16.msra.mxu0 0
      %874 = vmatprep.subr.bf16.mxu0 0
      %875 = vmatpush1.bf16.msra.mxu0 0
      %876 = vmatprep.subr.bf16.mxu0 0
      %877 = vmatpush1.bf16.msra.mxu0 0
      %878 = vmatprep.subr.bf16.mxu0 0
      %879 = vmatpush1.bf16.msra.mxu0 0
      %880 = vmatprep.subr.bf16.mxu0 0
      %881 = vmatpush1.bf16.msra.mxu0 0
      %882 = vmatprep.subr.bf16.mxu0 0
      %883 = vmatpush1.bf16.msra.mxu0 0
      %884 = vmatprep.mubr.bf16.mxu0 0
      %885 = vmatmul.mubr.bf16.gmra.mrb[0].mxu0 %v838
      %v886 = vpop.f32.mrb[0].mxu0
      %v887 = vadd.f32 0.0, %v886
      %v888 = vpop.f32.mrb[0].mxu0
      %v889 = vpop.f32.mrb[0].mxu0
      %v890 = vadd.f32 0.0, %v889
      %v891 = vpop.f32.mrb[0].mxu0
      %892 = vmatprep.mubr.bf16.mxu0 0
      %893 = vmatmul.mubr.bf16.gmra.mrb[0].mxu0 %v841
      %v894 = vpop.f32.mrb[0].mxu0
      %v895 = vadd.f32 0.0, %v894
      %v896 = vpop.f32.mrb[0].mxu0
      %v897 = vpop.f32.mrb[0].mxu0
      %v898 = vadd.f32 0.0, %v897
      %v899 = vpop.f32.mrb[0].mxu0
      %900 = vmatprep.mubr.bf16.mxu0 0
      %901 = vmatmul.mubr.bf16.gmra.mrb[0].mxu0 %v844
      %v902 = vpop.f32.mrb[0].mxu0
      %v903 = vadd.f32 0.0, %v902
      %v904 = vpop.f32.mrb[0].mxu0
      %v905 = vpop.f32.mrb[0].mxu0
      %v906 = vadd.f32 0.0, %v905
      %v907 = vpop.f32.mrb[0].mxu0
      %908 = vmatprep.mubr.bf16.mxu0 0
      %909 = vmatmul.mubr.bf16.gmra.mrb[0].mxu0 %v847
      %v910 = vpop.f32.mrb[0].mxu0
      %v911 = vadd.f32 0.0, %v910
      %v912 = vpop.f32.mrb[0].mxu0
      %v913 = vpop.f32.mrb[0].mxu0
      %v914 = vadd.f32 0.0, %v913
      %v915 = vpop.f32.mrb[0].mxu0
      %916 = vdwg.mxu0
      %v917 = vadd.f32 %v819, %v887
      %v918 = vadd.f32 %v820, %v890
      %v919 = vadd.f32 %v821, %v895
      %v920 = vadd.f32 %v822, %v898
      %v921 = vadd.f32 %v823, %v903
      %v922 = vadd.f32 %v824, %v906
      %v923 = vadd.f32 %v825, %v911
      %v924 = vadd.f32 %v826, %v914
      %v926 = vunpack.c.l.b16 %v163
      %v927 = vpack.c.b16 %v926, %v627
      %v929 = vsel %vm301, %v927, 0
      %v932 = vsel %vm314, %v171, 0
      %934 = vmatprep.subr.bf16.mxu0 0
      %935 = vmatpush1.bf16.msra.mxu0 %v932
      %936 = vmatprep.subr.bf16.mxu0 0
      %937 = vmatpush1.bf16.msra.mxu0 0
      %938 = vmatprep.subr.bf16.mxu0 0
      %939 = vmatpush1.bf16.msra.mxu0 0
      %940 = vmatprep.subr.bf16.mxu0 0
      %941 = vmatpush1.bf16.msra.mxu0 0
      %942 = vmatprep.subr.bf16.mxu0 0
      %943 = vmatpush1.bf16.msra.mxu0 0
      %944 = vmatprep.subr.bf16.mxu0 0
      %945 = vmatpush1.bf16.msra.mxu0 0
      %946 = vmatprep.subr.bf16.mxu0 0
      %947 = vmatpush1.bf16.msra.mxu0 0
      %948 = vmatprep.subr.bf16.mxu0 0
      %949 = vmatpush1.bf16.msra.mxu0 0
      %950 = vmatprep.subr.bf16.mxu0 0
      %951 = vmatpush1.bf16.msra.mxu0 0
      %952 = vmatprep.subr.bf16.mxu0 0
      %953 = vmatpush1.bf16.msra.mxu0 0
      %954 = vmatprep.subr.bf16.mxu0 0
      %955 = vmatpush1.bf16.msra.mxu0 0
      %956 = vmatprep.subr.bf16.mxu0 0
      %957 = vmatpush1.bf16.msra.mxu0 0
      %958 = vmatprep.subr.bf16.mxu0 0
      %959 = vmatpush1.bf16.msra.mxu0 0
      %960 = vmatprep.subr.bf16.mxu0 0
      %961 = vmatpush1.bf16.msra.mxu0 0
      %962 = vmatprep.subr.bf16.mxu0 0
      %963 = vmatpush1.bf16.msra.mxu0 0
      %964 = vmatprep.subr.bf16.mxu0 0
      %965 = vmatpush1.bf16.msra.mxu0 0
      %966 = vmatprep.mubr.bf16.mxu0 0
      %967 = vmatmul.mubr.bf16.gmra.mrb[0].mxu0 %v407
      %v968 = vpop.f32.mrb[0].mxu0
      %v969 = vadd.f32 0.0, %v968
      %v970 = vpop.f32.mrb[0].mxu0
      %v971 = vpop.f32.mrb[0].mxu0
      %v972 = vadd.f32 0.0, %v971
      %v973 = vpop.f32.mrb[0].mxu0
      %974 = vmatprep.mubr.bf16.mxu0 0
      %975 = vmatmul.mubr.bf16.gmra.mrb[0].mxu0 %v410
      %v976 = vpop.f32.mrb[0].mxu0
      %v977 = vadd.f32 0.0, %v976
      %v978 = vpop.f32.mrb[0].mxu0
      %v979 = vpop.f32.mrb[0].mxu0
      %v980 = vadd.f32 0.0, %v979
      %v981 = vpop.f32.mrb[0].mxu0
      %982 = vmatprep.mubr.bf16.mxu0 0
      %983 = vmatmul.mubr.bf16.gmra.mrb[0].mxu0 %v413
      %v984 = vpop.f32.mrb[0].mxu0
      %v985 = vadd.f32 0.0, %v984
      %v986 = vpop.f32.mrb[0].mxu0
      %v987 = vpop.f32.mrb[0].mxu0
      %v988 = vadd.f32 0.0, %v987
      %v989 = vpop.f32.mrb[0].mxu0
      %990 = vmatprep.mubr.bf16.mxu0 0
      %991 = vmatmul.mubr.bf16.gmra.mrb[0].mxu0 %v929
      %v992 = vpop.f32.mrb[0].mxu0
      %v993 = vadd.f32 0.0, %v992
      %v994 = vpop.f32.mrb[0].mxu0
      %v995 = vpop.f32.mrb[0].mxu0
      %v996 = vadd.f32 0.0, %v995
      %v997 = vpop.f32.mrb[0].mxu0
      %998 = vdwg.mxu0
      %v999 = vadd.f32 %v917, %v969
      %v1000 = vadd.f32 %v918, %v972
      %v1001 = vadd.f32 %v919, %v977
      %v1002 = vadd.f32 %v920, %v980
      %v1003 = vadd.f32 %v921, %v985
      %v1004 = vadd.f32 %v922, %v988
      %v1005 = vadd.f32 %v923, %v993
      %v1006 = vadd.f32 %v924, %v996
      %v1008 = vshrl.u32 %v163, 16
      %v1010 = vrot.slane %v1008, 4
      %v1011 = vshll.u32 %v163, 16
      %v1013 = vrot.slane %v1011, 5
      %v1014 = vor.u32 %v1010, %v1013
      %v1015 = vrot.slane %v1014, 4
      %v1017 = vshll.u32 %v164, 16
      %v1019 = vrot.slane %v1017, 5
      %v1020 = vsel %vm176, %v1015, %v1019
      %v1021 = vunpack.c.l.b16 %v1020
      %v1022 = vpack.c.b16 %v1021, %v734
      %v1024 = vsel %vm301, %v1022, 0
      %v1027 = vsel %vm314, %v172, 0
      %1029 = vmatprep.subr.bf16.mxu0 0
      %1030 = vmatpush1.bf16.msra.mxu0 %v1027
      %1031 = vmatprep.subr.bf16.mxu0 0
      %1032 = vmatpush1.bf16.msra.mxu0 0
      %1033 = vmatprep.subr.bf16.mxu0 0
      %1034 = vmatpush1.bf16.msra.mxu0 0
      %1035 = vmatprep.subr.bf16.mxu0 0
      %1036 = vmatpush1.bf16.msra.mxu0 0
      %1037 = vmatprep.subr.bf16.mxu0 0
      %1038 = vmatpush1.bf16.msra.mxu0 0
      %1039 = vmatprep.subr.bf16.mxu0 0
      %1040 = vmatpush1.bf16.msra.mxu0 0
      %1041 = vmatprep.subr.bf16.mxu0 0
      %1042 = vmatpush1.bf16.msra.mxu0 0
      %1043 = vmatprep.subr.bf16.mxu0 0
      %1044 = vmatpush1.bf16.msra.mxu0 0
      %1045 = vmatprep.subr.bf16.mxu0 0
      %1046 = vmatpush1.bf16.msra.mxu0 0
      %1047 = vmatprep.subr.bf16.mxu0 0
      %1048 = vmatpush1.bf16.msra.mxu0 0
      %1049 = vmatprep.subr.bf16.mxu0 0
      %1050 = vmatpush1.bf16.msra.mxu0 0
      %1051 = vmatprep.subr.bf16.mxu0 0
      %1052 = vmatpush1.bf16.msra.mxu0 0
      %1053 = vmatprep.subr.bf16.mxu0 0
      %1054 = vmatpush1.bf16.msra.mxu0 0
      %1055 = vmatprep.subr.bf16.mxu0 0
      %1056 = vmatpush1.bf16.msra.mxu0 0
      %1057 = vmatprep.subr.bf16.mxu0 0
      %1058 = vmatpush1.bf16.msra.mxu0 0
      %1059 = vmatprep.subr.bf16.mxu0 0
      %1060 = vmatpush1.bf16.msra.mxu0 0
      %1061 = vmatprep.mubr.bf16.mxu0 0
      %1062 = vmatmul.mubr.bf16.gmra.mrb[0].mxu0 %v306
      %v1063 = vpop.f32.mrb[0].mxu0
      %v1064 = vadd.f32 0.0, %v1063
      %v1065 = vpop.f32.mrb[0].mxu0
      %v1066 = vpop.f32.mrb[0].mxu0
      %v1067 = vadd.f32 0.0, %v1066
      %v1068 = vpop.f32.mrb[0].mxu0
      %1069 = vmatprep.mubr.bf16.mxu0 0
      %1070 = vmatmul.mubr.bf16.gmra.mrb[0].mxu0 %v309
      %v1071 = vpop.f32.mrb[0].mxu0
      %v1072 = vadd.f32 0.0, %v1071
      %v1073 = vpop.f32.mrb[0].mxu0
      %v1074 = vpop.f32.mrb[0].mxu0
      %v1075 = vadd.f32 0.0, %v1074
      %v1076 = vpop.f32.mrb[0].mxu0
      %1077 = vmatprep.mubr.bf16.mxu0 0
      %1078 = vmatmul.mubr.bf16.gmra.mrb[0].mxu0 %v312
      %v1079 = vpop.f32.mrb[0].mxu0
      %v1080 = vadd.f32 0.0, %v1079
      %v1081 = vpop.f32.mrb[0].mxu0
      %v1082 = vpop.f32.mrb[0].mxu0
      %v1083 = vadd.f32 0.0, %v1082
      %v1084 = vpop.f32.mrb[0].mxu0
      %1085 = vmatprep.mubr.bf16.mxu0 0
      %1086 = vmatmul.mubr.bf16.gmra.mrb[0].mxu0 %v1024
      %v1087 = vpop.f32.mrb[0].mxu0
      %v1088 = vadd.f32 0.0, %v1087
      %v1089 = vpop.f32.mrb[0].mxu0
      %v1090 = vpop.f32.mrb[0].mxu0
      %v1091 = vadd.f32 0.0, %v1090
      %v1092 = vpop.f32.mrb[0].mxu0
      %1093 = vdwg.mxu0
      %v1094 = vadd.f32 %v999, %v1064
      %v1095 = vadd.f32 %v1000, %v1067
      %v1096 = vadd.f32 %v1001, %v1072
      %v1097 = vadd.f32 %v1002, %v1075
      %v1098 = vadd.f32 %v1003, %v1080
      %v1099 = vadd.f32 %v1004, %v1083
      %v1100 = vadd.f32 %v1005, %v1088
      %v1101 = vadd.f32 %v1006, %v1091
      %v1103 = vrot.slane %v163, 5
      %v1104 = vrot.slane %v1103, 4
      %v1105 = vrot.slane %v164, 5
      %v1106 = vsel %vm493, %v1104, %v1105
      %v1107 = vunpack.c.l.b16 %v1106
      %v1108 = vpack.c.b16 %v1107, %v832
      %v1110 = vsel %vm301, %v1108, 0
      %v1113 = vsel %vm314, %v173, 0
      %1115 = vmatprep.subr.bf16.mxu0 0
      %1116 = vmatpush1.bf16.msra.mxu0 %v1113
      %1117 = vmatprep.subr.bf16.mxu0 0
      %1118 = vmatpush1.bf16.msra.mxu0 0
      %1119 = vmatprep.subr.bf16.mxu0 0
      %1120 = vmatpush1.bf16.msra.mxu0 0
      %1121 = vmatprep.subr.bf16.mxu0 0
      %1122 = vmatpush1.bf16.msra.mxu0 0
      %1123 = vmatprep.subr.bf16.mxu0 0
      %1124 = vmatpush1.bf16.msra.mxu0 0
      %1125 = vmatprep.subr.bf16.mxu0 0
      %1126 = vmatpush1.bf16.msra.mxu0 0
      %1127 = vmatprep.subr.bf16.mxu0 0
      %1128 = vmatpush1.bf16.msra.mxu0 0
      %1129 = vmatprep.subr.bf16.mxu0 0
      %1130 = vmatpush1.bf16.msra.mxu0 0
      %1131 = vmatprep.subr.bf16.mxu0 0
      %1132 = vmatpush1.bf16.msra.mxu0 0
      %1133 = vmatprep.subr.bf16.mxu0 0
      %1134 = vmatpush1.bf16.msra.mxu0 0
      %1135 = vmatprep.subr.bf16.mxu0 0
      %1136 = vmatpush1.bf16.msra.mxu0 0
      %1137 = vmatprep.subr.bf16.mxu0 0
      %1138 = vmatpush1.bf16.msra.mxu0 0
      %1139 = vmatprep.subr.bf16.mxu0 0
      %1140 = vmatpush1.bf16.msra.mxu0 0
      %1141 = vmatprep.subr.bf16.mxu0 0
      %1142 = vmatpush1.bf16.msra.mxu0 0
      %1143 = vmatprep.subr.bf16.mxu0 0
      %1144 = vmatpush1.bf16.msra.mxu0 0
      %1145 = vmatprep.subr.bf16.mxu0 0
      %1146 = vmatpush1.bf16.msra.mxu0 0
      %1147 = vmatprep.mubr.bf16.mxu0 0
      %1148 = vmatmul.mubr.bf16.gmra.mrb[0].mxu0 %v542
      %v1149 = vpop.f32.mrb[0].mxu0
      %v1150 = vadd.f32 0.0, %v1149
      %v1151 = vpop.f32.mrb[0].mxu0
      %v1152 = vpop.f32.mrb[0].mxu0
      %v1153 = vadd.f32 0.0, %v1152
      %v1154 = vpop.f32.mrb[0].mxu0
      %1155 = vmatprep.mubr.bf16.mxu0 0
      %1156 = vmatmul.mubr.bf16.gmra.mrb[0].mxu0 %v545
      %v1157 = vpop.f32.mrb[0].mxu0
      %v1158 = vadd.f32 0.0, %v1157
      %v1159 = vpop.f32.mrb[0].mxu0
      %v1160 = vpop.f32.mrb[0].mxu0
      %v1161 = vadd.f32 0.0, %v1160
      %v1162 = vpop.f32.mrb[0].mxu0
      %1163 = vmatprep.mubr.bf16.mxu0 0
      %1164 = vmatmul.mubr.bf16.gmra.mrb[0].mxu0 %v548
      %v1165 = vpop.f32.mrb[0].mxu0
      %v1166 = vadd.f32 0.0, %v1165
      %v1167 = vpop.f32.mrb[0].mxu0
      %v1168 = vpop.f32.mrb[0].mxu0
      %v1169 = vadd.f32 0.0, %v1168
      %v1170 = vpop.f32.mrb[0].mxu0
      %1171 = vmatprep.mubr.bf16.mxu0 0
      %1172 = vmatmul.mubr.bf16.gmra.mrb[0].mxu0 %v1110
      %v1173 = vpop.f32.mrb[0].mxu0
      %v1174 = vadd.f32 0.0, %v1173
      %v1175 = vpop.f32.mrb[0].mxu0
      %v1176 = vpop.f32.mrb[0].mxu0
      %v1177 = vadd.f32 0.0, %v1176
      %v1178 = vpop.f32.mrb[0].mxu0
      %1179 = vdwg.mxu0
      %v1180 = vadd.f32 %v1094, %v1150
      %v1181 = vadd.f32 %v1095, %v1153
      %v1182 = vadd.f32 %v1096, %v1158
      %v1183 = vadd.f32 %v1097, %v1161
      %v1184 = vadd.f32 %v1098, %v1166
      %v1185 = vadd.f32 %v1099, %v1169
      %v1186 = vadd.f32 %v1100, %v1174
      %v1187 = vadd.f32 %v1101, %v1177
      %vm1188 = vcmask 261120
      %v1189 = vsel %vm1188, %v1180, 0.0
      %v1190 = vsel %vm1188, %v1181, 0.0
      %v1191 = vadd.f32 %v1189, %v1190
      %v1192 = vsel %vm1188, %v1182, 0.0
      %v1193 = vadd.f32 %v1191, %v1192
      %v1194 = vsel %vm1188, %v1183, 0.0
      %v1195 = vadd.f32 %v1193, %v1194
      %v1196 = vsel %vm1188, %v1184, 0.0
      %v1197 = vadd.f32 %v1195, %v1196
      %v1198 = vsel %vm1188, %v1185, 0.0
      %v1199 = vadd.f32 %v1197, %v1198
      %v1200 = vsel %vm1188, %v1186, 0.0
      %v1201 = vadd.f32 %v1199, %v1200
      %v1202 = vsel %vm1188, %v1187, 0.0
      %v1203 = vadd.f32 %v1201, %v1202
      %v1204 = vrot.slane %v1203, 4
      %v1205 = vadd.f32 %v1203, %v1204
      %v1206 = vrot.slane %v1205, 2
      %v1207 = vadd.f32 %v1205, %v1206
      %v1208 = vrot.slane %v1207, 1
      %v1209 = vadd.f32 %v1207, %v1208
      %v1210 = vmul.f32 %v1180, %v1180
      %v1211 = vmul.f32 %v1181, %v1181
      %v1212 = vmul.f32 %v1182, %v1182
      %v1213 = vmul.f32 %v1183, %v1183
      %v1214 = vmul.f32 %v1184, %v1184
      %v1215 = vmul.f32 %v1185, %v1185
      %v1216 = vmul.f32 %v1186, %v1186
      %v1217 = vmul.f32 %v1187, %v1187
      %v1218 = vsel %vm1188, %v1210, 0.0
      %v1219 = vsel %vm1188, %v1211, 0.0
      %v1220 = vadd.f32 %v1218, %v1219
      %v1221 = vsel %vm1188, %v1212, 0.0
      %v1222 = vadd.f32 %v1220, %v1221
      %v1223 = vsel %vm1188, %v1213, 0.0
      %v1224 = vadd.f32 %v1222, %v1223
      %v1225 = vsel %vm1188, %v1214, 0.0
      %v1226 = vadd.f32 %v1224, %v1225
      %v1227 = vsel %vm1188, %v1215, 0.0
      %v1228 = vadd.f32 %v1226, %v1227
      %v1229 = vsel %vm1188, %v1216, 0.0
      %v1230 = vadd.f32 %v1228, %v1229
      %v1231 = vsel %vm1188, %v1217, 0.0
      %v1232 = vadd.f32 %v1230, %v1231
      %v1233 = vrot.slane %v1232, 4
      %v1234 = vadd.f32 %v1232, %v1233
      %v1235 = vrot.slane %v1234, 2
      %v1236 = vadd.f32 %v1234, %v1235
      %v1237 = vrot.slane %v1236, 1
      %v1238 = vadd.f32 %v1236, %v1237
      %1240 = vrot.lane.b32.xlu0 %v1209, 120
      %v1241 = vpop.permute.xlu0 %1240
      %v1243 = vadd.f32 %v1209, %v1241
      %1245 = vrot.lane.b32.xlu0 %v1238, 120
      %v1246 = vpop.permute.xlu0 %1245
      %v1248 = vadd.f32 %v1238, %v1246
      %1249 = vrot.lane.b32.xlu0 %v1209, 112
      %v1250 = vpop.permute.xlu0 %1249
      %v1252 = vadd.f32 %v1243, %v1250
      %1253 = vrot.lane.b32.xlu0 %v1238, 112
      %v1254 = vpop.permute.xlu0 %1253
      %v1256 = vadd.f32 %v1248, %v1254
      %1257 = vrot.lane.b32.xlu0 %v1209, 104
      %v1258 = vpop.permute.xlu0 %1257
      %v1260 = vadd.f32 %v1252, %v1258
      %1261 = vrot.lane.b32.xlu0 %v1238, 104
      %v1262 = vpop.permute.xlu0 %1261
      %v1264 = vadd.f32 %v1256, %v1262
      %v1265 = vrcp.pop 256.0
      %v1266 = vmul.f32 %v1260, %v1265
      %v1267 = vmul.f32 %v1264, %v1265
      %v1268 = vmul.f32 %v1266, %v1266
      %v1269 = vsub.f32 %v1267, %v1268
      %v1270 = vmax.f32 %v1269, 0.0
      %v1271 = vadd.f32 %v1270, 1e-05
      %v1272 = vrsqrt.pop %v1271
      %1274 = vrot.lane.b32.xlu0 %v1272, 8
      %v1275 = vpop.permute.xlu0 %1274
      %1277 = vrot.lane.b32.xlu0 %v1272, 16
      %v1278 = vpop.permute.xlu0 %1277
      %1280 = vrot.lane.b32.xlu0 %v1272, 24
      %v1281 = vpop.permute.xlu0 %1280
      %v1283 = vsel %vm301, %v1272, %v1275
      %vm1284 = vcmask 130048
      %v1285 = vsel %vm1284, %v1283, %v1278
      %vm1286 = vcmask 195584
      %v1287 = vsel %vm1286, %v1285, %v1281
      %v1288 = vmul.f32 %v1266, %v1272
      %1290 = vrot.lane.b32.xlu0 %v1288, 8
      %v1291 = vpop.permute.xlu0 %1290
      %1293 = vrot.lane.b32.xlu0 %v1288, 16
      %v1294 = vpop.permute.xlu0 %1293
      %1296 = vrot.lane.b32.xlu0 %v1288, 24
      %v1297 = vpop.permute.xlu0 %1296
      %v1299 = vsel %vm301, %v1288, %v1291
      %v1300 = vsel %vm1284, %v1299, %v1294
      %v1301 = vsel %vm1286, %v1300, %v1297
      %v1302 = vlaneseq
      %v1303 = vshrl.u32 %v1302, 7
      %v1304 = vsub.s32 0, %v1303
      %v1305 = vrot.slane %v1287, %v1304
      %v1306 = vmul.f32 %v1180, %v1305
      %v1307 = vmul.f32 %v1181, %v1305
      %v1308 = vmul.f32 %v1182, %v1305
      %v1309 = vmul.f32 %v1183, %v1305
      %v1310 = vmul.f32 %v1184, %v1305
      %v1311 = vmul.f32 %v1185, %v1305
      %v1312 = vmul.f32 %v1186, %v1305
      %v1313 = vmul.f32 %v1187, %v1305
      %v1314 = vlaneseq
      %v1315 = vshrl.u32 %v1314, 7
      %v1316 = vsub.s32 0, %v1315
      %v1317 = vrot.slane %v1301, %v1316
      %v1318 = vsub.f32 %v1306, %v1317
      %v1319 = vsub.f32 %v1307, %v1317
      %v1320 = vsub.f32 %v1308, %v1317
      %v1321 = vsub.f32 %v1309, %v1317
      %v1322 = vsub.f32 %v1310, %v1317
      %v1323 = vsub.f32 %v1311, %v1317
      %v1324 = vsub.f32 %v1312, %v1317
      %v1325 = vsub.f32 %v1313, %v1317
      %v1326 = vmax.f32 %v1318, 0.0
      %v1327 = vmax.f32 %v1319, 0.0
      %v1328 = vmax.f32 %v1320, 0.0
      %v1329 = vmax.f32 %v1321, 0.0
      %v1330 = vmax.f32 %v1322, 0.0
      %v1331 = vmax.f32 %v1323, 0.0
      %v1332 = vmax.f32 %v1324, 0.0
      %v1333 = vmax.f32 %v1325, 0.0
      %1334 = vst.msk [vmem:[%s143] sm:$0xff] %vm1188, %v1326
      %1335 = vst.msk [vmem:[%s143 + $0x8] sm:$0xff] %vm1188, %v1327
      %1336 = vst.msk [vmem:[%s143 + $0x10] sm:$0xff] %vm1188, %v1328
      %1337 = vst.msk [vmem:[%s143 + $0x18] sm:$0xff] %vm1188, %v1329
      %1338 = vst.msk [vmem:[%s143 + $0x20] sm:$0xff] %vm1188, %v1330
      %1339 = vst.msk [vmem:[%s143 + $0x28] sm:$0xff] %vm1188, %v1331
      %1340 = vst.msk [vmem:[%s143 + $0x30] sm:$0xff] %vm1188, %v1332
      %1341 = vst.msk [vmem:[%s143 + $0x38] sm:$0xff] %vm1188, %v1333
      %p1342 = scmp.lt.s32.totalorder %s13, 1
      %s1343 = scalar_select %p1342, %s13, 1
      %s1344 = smul.addr %s1343, 8
      %s1345 = smul.addr %s1344, 8
      %s1346 = scalar_lea.vmem %s2, %s1345
      // Predicated region
      $region29: #{unet_up_forward.1} parent=27 // pred_check
        %p1347 = pneg %p78
      $region30: #{unet_up_forward.1} parent=27 // pred_check_branch
        %1349 = sbr.rel (%p1347) target = $region32
      $region31: #{unet_up_forward.1} parent=27 // pred_region
        _
      $region32: #{unet_up_forward.1} parent=27 // pred_fallthru
        _
    $region28: #{unet_up_forward.1} parent=5 // pred_fallthru
      _
    %p1350 = scmp.le.s32.totalorder 2, %s8
    // Predicated region
    $region33: #{unet_up_forward.1} parent=5 // pred_check
      %p1351 = pneg %p1350
    $region34: #{unet_up_forward.1} parent=5 // pred_check_branch
      %1353 = sbr.rel (%p1351) target = $region36
    $region35: #{unet_up_forward.1} parent=5 // pred_region
      %s1354 = ssub.s32 %s8, 2
      // Predicated region
      $region37: #{unet_up_forward.1} parent=35 // pred_check
        %p1355 = pneg %p84
      $region38: #{unet_up_forward.1} parent=35 // pred_check_branch
        %1357 = sbr.rel (%p1355) target = $region40
      $region39: #{unet_up_forward.1} parent=35 // pred_region
        %p1358 = scmp.lt.s32.totalorder %s14, 1
        %s1359 = scalar_select %p1358, %s14, 1
        %s1360 = smul.addr %s1359, 8
        %s1361 = smul.addr %s1360, 8
        %s1362 = scalar_lea.vmem %s2, %s1361
      $region40: #{unet_up_forward.1} parent=35 // pred_fallthru
        _
    $region36: #{unet_up_forward.1} parent=5 // pred_fallthru
      _
  $region6: #{unet_up_forward.1} parent=0 // loop_footer
    %s12 = sadd.s32 1, %s8
  $region7: #{unet_up_forward.1} parent=0 // loop_footer_branch
    %7 = sbr.rel target = $region3
  $region8: #{unet_up_forward.1} parent=0 // loop_exit
    _

</llo_original>
